<compile_context>
chip_gen: v6e
topology: v6e:2x2x1
jax: 0.10.0
libtpu: 0.0.40
codegen_flags: <defaults>
</compile_context>

<pallas_src>
import functools
import math

import jax
import jax.numpy as jnp
from jax import lax
from jax.experimental import pallas as pl
from jax.experimental.pallas import tpu as pltpu


# --------------------------- roll-direction probe -----------------------------


@functools.lru_cache(maxsize=None)
def _roll_matches_np():
    """True iff pltpu.roll(x, s, ax) == np.roll(x, s, ax) (out[i] = x[i - s])."""
    def k(x_ref, o_ref):
        o_ref[...] = pltpu.roll(x_ref[...], shift=1, axis=1)

    x = jnp.arange(8 * 128, dtype=jnp.float32).reshape(8, 128)
    y = pl.pallas_call(k, out_shape=jax.ShapeDtypeStruct((8, 128), jnp.float32))(x)
    return bool(y[0, 0] == x[0, 127])


# ----------------------------- in-kernel helpers ------------------------------


def _shift_time(x, s, t_iota, roll_fwd):
    """y[:, t] = x[:, t + s] for 0 <= t + s < T, else 0 (zero 'same' padding).

    Implemented with an XLU lane rotation + iota mask instead of a (T, T)
    permutation matmul.
    """
    if s == 0:
        return x
    T = x.shape[-1]
    amt = (-s) % T if roll_fwd else s % T
    y = pltpu.roll(x, shift=amt, axis=1)
    zero = jnp.array(0.0, y.dtype)
    if s > 0:
        return jnp.where(t_iota < T - s, y, zero)
    return jnp.where(t_iota >= -s, y, zero)


def _group_norm_cf(x, agg, gamma, beta, tmask, eps):
    """GroupNorm on channels-first (C, T_pad); statistics over valid frames only.

    agg[i, j] = 1/(group_size * T_valid) if channels i, j share a group else 0,
    so the group mean / E[x^2] reduction + broadcast is a tiny MXU matmul
    instead of a reshape + cross-sublane reduce.
    """
    xm = x * tmask                                       # zero out pad frames
    s1 = jnp.sum(xm, axis=1, keepdims=True)              # (C, 1) lane reduce
    s2 = jnp.sum(xm * xm, axis=1, keepdims=True)         # (C, 1)
    mean = jnp.dot(agg, s1, preferred_element_type=jnp.float32)
    ex2 = jnp.dot(agg, s2, preferred_element_type=jnp.float32)
    var = jnp.maximum(ex2 - mean * mean, 0.0)            # guard cancellation
    return (x - mean) * lax.rsqrt(var + eps) * gamma + beta


# ------------------------------- fused kernel ---------------------------------


def _asrcnn_kernel(x_eo_ref, init_w_ref, agg_ref, sub_w3_ref, sub_w1_ref,
                   sub_vec_ref, ln_vec_ref, ctc_w1_ref, ctc_w2_ref,
                   misc_ref, ctc_b2_ref, o_ref,
                   *, H, n_mels, n_layers, t_valid, eps, roll_fwd):
    cdt = jnp.bfloat16
    T = x_eo_ref.shape[-1]
    t_iota = lax.broadcasted_iota(jnp.int32, (1, T), 1)
    tmask = (t_iota < t_valid).astype(jnp.float32)        # valid-frame mask

    x_eo = x_eo_ref[0]                                    # (2*n_mels, T) bf16
    xe = x_eo[0:n_mels, :]                                # x[:, 0::2]
    xo = x_eo[n_mels:2 * n_mels, :]                       # x[:, 1::2]

    def shl(v, s):
        return _shift_time(v, s, t_iota, roll_fwd)

    # MFCC DCT (folded into weights) + init_cnn Conv1d(k=7, s=2, p=3).
    # out[t] = sum_k W_k x[2t + k - 3]; taps mapped onto the even/odd streams.
    cols = jnp.concatenate(
        [shl(xo, -2), shl(xe, -1), shl(xo, -1), xe, xo, shl(xe, 1), shl(xo, 1)],
        axis=0)                                           # (7*n_mels, T) bf16
    h = jnp.dot(init_w_ref[...], cols, preferred_element_type=jnp.float32)
    h = (h + misc_ref[:, 0:1]) * tmask                    # bias; zero pad frames

    # n_layers x [ConvBlock(3 dilated residual sub-blocks) ; GroupNorm(1)]
    si = 0
    for li in range(n_layers):
        for di in range(3):                               # dilations 1, 3, 9
            d = 3 ** di
            res = h
            hb = h.astype(cdt)
            # dilated Conv1d(k=3, pad=d, dil=d): im2col (3H contraction) matmul
            cols3 = jnp.concatenate([shl(hb, -d), hb, shl(hb, d)], axis=0)
            a = jnp.dot(sub_w3_ref[si], cols3, preferred_element_type=jnp.float32)
            a = jnp.maximum(a + sub_vec_ref[si, :, 0:1], 0.0)      # bias + ReLU
            # GroupNorm(num_groups=8)
            a = _group_norm_cf(a, agg_ref[0], sub_vec_ref[si, :, 1:2],
                               sub_vec_ref[si, :, 2:3], tmask, eps)
            # Dropout(p=0.2) -> identity (eval)
            # Conv1d(k=1) + ReLU, then residual add; re-zero pad frames
            a = jnp.dot(sub_w1_ref[si], a.astype(cdt),
                        preferred_element_type=jnp.float32)
            a = jnp.maximum(a + sub_vec_ref[si, :, 3:4], 0.0)
            h = (a + res) * tmask
            si += 1
        # outer GroupNorm(num_groups=1)
        h = _group_norm_cf(h, agg_ref[1], ln_vec_ref[li, :, 0:1],
                           ln_vec_ref[li, :, 1:2], tmask, eps) * tmask

    # projection Conv1d(k=1) is folded into the first ctc Linear (host side).
    # ctc_linear: Linear + ReLU + Linear, evaluated channels-first.
    hh = jnp.dot(ctc_w1_ref[...], h.astype(cdt), preferred_element_type=jnp.float32)
    hh = jnp.maximum(hh + misc_ref[:, 1:2], 0.0)
    logit = jnp.dot(ctc_w2_ref[...], hh.astype(cdt),
                    preferred_element_type=jnp.float32) + ctc_b2_ref[...]
    o_ref[0] = logit.astype(o_ref.dtype)                  # (n_token, T)


_WEIGHT_ORDER = ("init_w", "agg", "sub_w3", "sub_w1", "sub_vec", "ln_vec",
                 "ctc_w1", "ctc_w2", "misc", "ctc_b2")


def asrcnn_forward(packed, x):
    """x: (B, n_mels, T) float32 -> ctc_logit: (B, T_out, n_token) float32."""
    B, n_mels, T = x.shape
    H = packed["ctc_w1"].shape[0]
    n_layers = packed["ln_vec"].shape[0]
    n_token = packed["ctc_b2"].shape[0]
    t_valid = (T - 1) // 2 + 1
    # Pad time so T_out is a multiple of 128 (lane-dense tiles and stores).
    t_pad = max(128, ((t_valid + 127) // 128) * 128)

    # Host-side prep: zero-pad time, split into even/odd phase streams (this is
    # the stride-2 subsampling of init_cnn), cast to bf16 for the MXU.
    xp = jnp.pad(x, ((0, 0), (0, 0), (0, 2 * t_pad - T)))
    x_eo = jnp.concatenate([xp[:, :, 0::2], xp[:, :, 1::2]], axis=1)
    x_eo = x_eo.astype(jnp.bfloat16)                      # (B, 2*n_mels, t_pad)

    weights = [packed[name] for name in _WEIGHT_ORDER]

    def const_spec(a):
        nd = a.ndim
        # Constant index_map: the same block is revisited for every batch step,
        # so it is only DMA'd in once.  (Could be single-buffered with
        # pipeline_mode=pl.Buffered(1) on VMEM-tight targets.)
        return pl.BlockSpec(a.shape, lambda b, nd=nd: (0,) * nd)

    n_sub = n_layers * 3
    flops = 2 * B * t_pad * (H * 7 * n_mels + n_sub * 4 * H * H
                             + H * H + n_token * H)
    bytes_accessed = (int(x_eo.size) * 2 + B * n_token * t_pad * 4
                      + sum(int(w.size) * w.dtype.itemsize for w in weights))

    kern = functools.partial(_asrcnn_kernel, H=H, n_mels=n_mels,
                             n_layers=n_layers, t_valid=t_valid, eps=1e-5,
                             roll_fwd=_roll_matches_np())
    out_cf = pl.pallas_call(
        kern,
        out_shape=jax.ShapeDtypeStruct((B, n_token, t_pad), jnp.float32),
        grid=(B,),
        in_specs=[pl.BlockSpec((1, 2 * n_mels, t_pad), lambda b: (b, 0, 0))]
                 + [const_spec(a) for a in weights],
        out_specs=pl.BlockSpec((1, n_token, t_pad), lambda b: (b, 0, 0)),
        compiler_params=pltpu.CompilerParams(
            dimension_semantics=("parallel",),
            vmem_limit_bytes=64 * 1024 * 1024),
        cost_estimate=pl.CostEstimate(
            flops=int(flops),
            transcendentals=int(B * (n_sub + n_layers) * H),
            bytes_accessed=int(bytes_accessed)),
    )(x_eo, *weights)
    # Drop pad frames; channels-first -> (B, T_out, n_token).
    return jnp.transpose(out_cf[:, :, :t_valid], (0, 2, 1))


# ----------------------------- parameter handling ------------------------------


def create_dct(n_mfcc, n_mels):
    """torchaudio create_dct(n_mfcc, n_mels, 'ortho'), as (n_mfcc, n_mels)."""
    n = jnp.arange(n_mels, dtype=jnp.float32)[None, :]
    k = jnp.arange(n_mfcc, dtype=jnp.float32)[:, None]
    dct = jnp.cos(jnp.pi / n_mels * (n + 0.5) * k)
    dct = dct.at[0].multiply(1.0 / math.sqrt(2.0))
    return dct * math.sqrt(2.0 / n_mels)


def init_params(key, input_dim, hidden_dim, n_token, n_layers):
    """Natural (PyTorch-layout) parameters: conv (Cout, Cin, K), linear (out, in)."""
    H = hidden_dim
    n_mfcc = input_dim // 2
    keys = iter(jax.random.split(key, 128))

    def u(shape, fan_in):
        s = 1.0 / math.sqrt(fan_in)
        return jax.random.uniform(next(keys), shape, jnp.float32, -s, s)

    nat = {"dct": create_dct(n_mfcc, input_dim)}
    nat["init_w"] = u((H, n_mfcc, 7), n_mfcc * 7)
    nat["init_b"] = u((H,), n_mfcc * 7)
    blocks = []
    for _ in range(n_layers):
        subs = []
        for _i in range(3):
            subs.append(dict(w3=u((H, H, 3), H * 3), b3=u((H,), H * 3),
                             gn_g=jnp.ones((H,), jnp.float32),
                             gn_b=jnp.zeros((H,), jnp.float32),
                             w1=u((H, H, 1), H), b1=u((H,), H)))
        blocks.append(dict(subs=subs, ln_g=jnp.ones((H,), jnp.float32),
                           ln_b=jnp.zeros((H,), jnp.float32)))
    nat["blocks"] = blocks
    nat["proj_w"] = u((H // 2, H, 1), H)
    nat["proj_b"] = u((H // 2,), H)
    nat["ctc_w1"] = u((H, H // 2), H // 2)
    nat["ctc_b1"] = u((H,), H // 2)
    nat["ctc_w2"] = u((n_token, H), H)
    nat["ctc_b2"] = u((n_token,), H)
    return nat


def pack_params(nat, T):
    """Pack natural params into the fused-kernel format: bf16 stacked-tap matmul
    weights, f32 GroupNorm aggregation matrices, lane-major per-channel vector
    bundles (no (H, 1) arrays), projection folded into the first ctc Linear."""
    H = nat["init_w"].shape[0]
    t_valid = (T - 1) // 2 + 1
    assert H % 8 == 0
    packed = {}

    # MFCC DCT folded into the 7 init-conv taps, taps along the contraction dim
    # in the kernel's im2col order (k = 0..6).
    w_eff = jnp.einsum("hmk,mn->hkn", nat["init_w"], nat["dct"])   # (H, 7, n_mels)
    packed["init_w"] = w_eff.reshape(H, -1).astype(jnp.bfloat16)

    # GroupNorm aggregation matrices (1/(group_size * T_valid) folded in).
    grp = jnp.arange(H) // (H // 8)
    agg8 = ((grp[:, None] == grp[None, :]).astype(jnp.float32)
            / float((H // 8) * t_valid))
    agg1 = jnp.full((H, H), 1.0 / float(H * t_valid), jnp.float32)
    packed["agg"] = jnp.stack([agg8, agg1])                        # (2, H, H)

    w3s, w1s, vecs = [], [], []
    for blk in nat["blocks"]:
        for sub in blk["subs"]:
            # (H, H, 3) -> (H, 3H), tap k in columns [k*H:(k+1)*H]
            w3s.append(jnp.transpose(sub["w3"], (0, 2, 1)).reshape(H, 3 * H))
            w1s.append(sub["w1"][:, :, 0])
            vecs.append(jnp.stack([sub["b3"], sub["gn_g"], sub["gn_b"],
                                   sub["b1"]], axis=1))            # (H, 4)
    packed["sub_w3"] = jnp.stack(w3s).astype(jnp.bfloat16)         # (n_sub, H, 3H)
    packed["sub_w1"] = jnp.stack(w1s).astype(jnp.bfloat16)         # (n_sub, H, H)
    packed["sub_vec"] = jnp.stack(vecs)                            # (n_sub, H, 4)
    packed["ln_vec"] = jnp.stack(
        [jnp.stack([b["ln_g"], b["ln_b"]], axis=1) for b in nat["blocks"]])

    # projection (k=1) folded into the first ctc Linear (no nonlinearity between).
    w1_eff = nat["ctc_w1"] @ nat["proj_w"][:, :, 0]                # (H, H)
    b1_eff = nat["ctc_w1"] @ nat["proj_b"] + nat["ctc_b1"]         # (H,)
    packed["ctc_w1"] = w1_eff.astype(jnp.bfloat16)
    packed["ctc_w2"] = nat["ctc_w2"].astype(jnp.bfloat16)
    packed["misc"] = jnp.stack([nat["init_b"], b1_eff], axis=1)    # (H, 2)
    packed["ctc_b2"] = nat["ctc_b2"].reshape(-1, 1)                # (n_token, 1)
    return packed


# ------------------------- pure-JAX reference (check) --------------------------


def _conv1d_ref(x, w, b, *, stride=1, padding=0, dilation=1):
    B, Cin, T = x.shape
    Cout, _, K = w.shape
    xp = jnp.pad(x, ((0, 0), (0, 0), (padding, padding)))
    Tp = T + 2 * padding
    Tout = (Tp - dilation * (K - 1) - 1) // stride + 1
    cols = jnp.stack(
        [xp[:, :, k * dilation: k * dilation + (Tout - 1) * stride + 1: stride]
         for k in range(K)], axis=1)                      # (B, K, Cin, Tout)
    return jnp.einsum("bkct,ock->bot", cols, w) + b[None, :, None]


def _gn_ref(x, gamma, beta, groups, eps=1e-5):
    B, C, T = x.shape
    xg = x.reshape(B, groups, C // groups, T)
    mean = xg.mean(axis=(2, 3), keepdims=True)
    var = xg.var(axis=(2, 3), keepdims=True)
    xn = ((xg - mean) / jnp.sqrt(var + eps)).reshape(B, C, T)
    return xn * gamma[None, :, None] + beta[None, :, None]


def reference_forward(nat, x):
    h = jnp.einsum("mn,bnt->bmt", nat["dct"], x)
    h = _conv1d_ref(h, nat["init_w"], nat["init_b"], stride=2, padding=3)
    for blk in nat["blocks"]:
        for i, sub in enumerate(blk["subs"]):
            d = 3 ** i
            res = h
            y = jax.nn.relu(_conv1d_ref(h, sub["w3"], sub["b3"],
                                        padding=d, dilation=d))
            y = _gn_ref(y, sub["gn_g"], sub["gn_b"], groups=8)
            y = jax.nn.relu(_conv1d_ref(y, sub["w1"], sub["b1"]))
            h = y + res
        h = _gn_ref(h, blk["ln_g"], blk["ln_b"], groups=1)
    h = _conv1d_ref(h, nat["proj_w"], nat["proj_b"])
    h = jnp.transpose(h, (0, 2, 1))
    h1 = jax.nn.relu(h @ nat["ctc_w1"].T + nat["ctc_b1"])
    return h1 @ nat["ctc_w2"].T + nat["ctc_b2"]


# ------------------------------------ main -------------------------------------


if __name__ == "__main__":
    input_dim, hidden_dim, n_token, n_layers = 80, 64, 10, 2
    B, T = 2, 32

    key = jax.random.PRNGKey(0)
    kp, kx = jax.random.split(key)
    nat = init_params(kp, input_dim, hidden_dim, n_token, n_layers)
    x = jax.random.normal(kx, (B, input_dim, T), jnp.float32)
    packed = pack_params(nat, T)

    ctc_logit = asrcnn_forward(packed, x)
    jax.block_until_ready(ctc_logit)

    t_out = (T - 1) // 2 + 1
    assert ctc_logit.shape == (B, t_out, n_token), ctc_logit.shape
    assert bool(jnp.all(jnp.isfinite(ctc_logit)))

    ref = reference_forward(nat, x)
    err = float(jnp.max(jnp.abs(ctc_logit - ref)))
    # bf16 MXU inputs with f32 accumulation: tolerance loosened accordingly.
    assert err < 5e-2, f"max abs err vs reference: {err}"
    print("KERNEL_OK")
</pallas_src>

<mosaic_0001>
module attributes {stable_mosaic.version = 11 : i64} {
  func.func @k(%arg0: memref<8x128xf32, #tpu.memory_space<vmem>>, %arg1: memref<8x128xf32, #tpu.memory_space<vmem>>) attributes {dimension_semantics = [], scalar_prefetch = 0 : i64, scratch_operands = 0 : i64, tpu.core_type = #tpu.core_type<tc>} {
    %c0 = arith.constant 0 : index
    %c0_0 = arith.constant 0 : index
    %0 = vector.load %arg0[%c0, %c0_0] : memref<8x128xf32, #tpu.memory_space<vmem>>, vector<8x128xf32>
    %c1_i32 = arith.constant 1 : i32
    %1 = tpu.dynamic_rotate %0 by %c1_i32 dim 1 : vector<8x128xf32>, i32 -> vector<8x128xf32>
    %c0_1 = arith.constant 0 : index
    %c0_2 = arith.constant 0 : index
    %2 = vector.load %arg1[%c0_1, %c0_2] : memref<8x128xf32, #tpu.memory_space<vmem>>, vector<8x128xf32>
    tpu.vector_store %arg1[%c0_1, %c0_2], %1 {strides = array<i32>} : memref<8x128xf32, #tpu.memory_space<vmem>>, vector<8x128xf32>,
    return
  }
}

</mosaic_0001>

<llo_original>
// kernel: tpu_custom_call.1
$region0: #{tpu_custom_call.1}
  #allocation0 [shape = 'u32[]', space=smem, size = 0x4, offset = 0x4, fixed_abs, tag = 'smem constant byte address 0x4 - core index']
  #allocation1 [shape = 'u32[144,128]{1,0:T(1,128)}', space=vmem, size = 0x12000, scoped, tag = 'internal scratch']
  %s0 = inlined_call_operand.hbm [shape: f32[8,128], index: 0, kind: input, shape index: {}]
  %s1 = inlined_call_operand.hbm [shape: f32[8,128], index: 1, kind: output, shape index: {}]
  %s2 = sld [smem:[#allocation0]]
  $region18: #{tpu_custom_call.1} parent=0
    _
  %s4 = ssub.s32 1, %s2
  %s5 = scalar_select 0, %s4, %s2
  $region1: #{tpu_custom_call.1} parent=0
    #allocation2 [shape = 'u8[4096]{0}', space=vmem, size = 0x1000, scoped, tag = 'input window, operand 0, single buffered']
    #allocation3 [shape = 's32[1]{0}', space=sflag, size = 0x4, scoped, tag = 'scoped memory for tpu_custom_call.1']
    #allocation4 [shape = 's32[1]{0}', space=sflag, size = 0x4, scoped, tag = 'scoped memory for tpu_custom_call.1']
    #allocation5 [shape = 'u8[4096]{0}', space=vmem, size = 0x1000, scoped, tag = 'output window, operand 0, single buffered']
    %6 = vsyncpa [#allocation3], 0
    %7 = vsyncpa [#allocation4], 0
    // Predicated region
    $region2: #{tpu_custom_call.1} parent=1 // pred_check
      _
    $region3: #{tpu_custom_call.1} parent=1 // pred_check_branch
      %9 = sbr.rel (0) target = $region5
    $region4: #{tpu_custom_call.1} parent=1 // pred_region
      %s11 = ssub.s32 128, 128
      %12 = vsyncadd [#allocation3], %s11
      %s14 = sshll.u32 [#allocation2], 4
      %s15 = int_to_ptr.vmem [resolvable:$true] %s14
      %17 = dma.hbm_to_vmem [thread:$0]  %s0, 128, %s15, [#allocation3]
    $region5: #{tpu_custom_call.1} parent=1 // pred_fallthru
      _
    // Predicated region
    $region6: #{tpu_custom_call.1} parent=1 // pred_check
      _
    $region7: #{tpu_custom_call.1} parent=1 // pred_check_branch
      %19 = sbr.rel (0) target = $region9
    $region8: #{tpu_custom_call.1} parent=1 // pred_region
      %20 = dma.done [#allocation3], 128
    $region9: #{tpu_custom_call.1} parent=1 // pred_fallthru
      _
    %v21 = vld [vmem:[#allocation2] sm:$0xff]
    %22 = vrot.lane.b32.xlu0 %v21, 1
    %v23 = vpop.permute.xlu0 %22
    %24 = vst [vmem:[#allocation5] sm:$0xff] %v23
    // Predicated region
    $region10: #{tpu_custom_call.1} parent=1 // pred_check
      _
    $region11: #{tpu_custom_call.1} parent=1 // pred_check_branch
      %26 = sbr.rel (0) target = $region13
    $region12: #{tpu_custom_call.1} parent=1 // pred_region
      %s28 = ssub.s32 128, 128
      %29 = vsyncadd [#allocation4], %s28
      %s31 = sshll.u32 [#allocation5], 4
      %s32 = int_to_ptr.vmem [resolvable:$true] %s31
      %34 = dma.vmem_to_hbm [thread:$0]  %s32, 128, %s1, [#allocation4]
    $region13: #{tpu_custom_call.1} parent=1 // pred_fallthru
      _
    // Predicated region
    $region14: #{tpu_custom_call.1} parent=1 // pred_check
      _
    $region15: #{tpu_custom_call.1} parent=1 // pred_check_branch
      %36 = sbr.rel (0) target = $region17
    $region16: #{tpu_custom_call.1} parent=1 // pred_region
      %37 = dma.done [#allocation4], 128
    $region17: #{tpu_custom_call.1} parent=1 // pred_fallthru
      _
    %38 = vsyncpa [#allocation3], 1
    %39 = vsyncpa [#allocation4], 1

</llo_original>
